<compile_context>
chip_gen: v5e
topology: v5e:2x2
jax: 0.10.0
libtpu: 0.0.40
codegen_flags: <defaults>
</compile_context>

<pallas_src>
import functools
import math

import jax
import jax.numpy as jnp
from jax.experimental import pallas as pl
from jax.experimental.pallas import tpu as pltpu


_LANES = 384                     # 128 vertices * 3 coords per slab row
_VERTS_PER_ROW = _LANES // 3     # 128


def _round_up(x, m):
    return ((x + m - 1) // m) * m


def _default_num_parallel():
    """2 parallel grid slices on multi-TensorCore chips, else 1 (v5e/v6e)."""
    try:
        kind = jax.devices()[0].device_kind.lower().replace(" ", "")
    except Exception:
        return 1
    if any(tag in kind for tag in ("v7", "v5p", "v6p", "v4")):
        return 2
    return 1


# ----------------------------------------------------------------------------
# Pallas kernel
# ----------------------------------------------------------------------------
def _dist_sum_kernel(pred_ref, gt_ref, sel_ref, out_ref, acc_ref, *,
                     nj, block_rows, total_rows, last_block):
    # pred_ref, gt_ref : (TR, 384) VMEM (f32 or bf16) -- 128 vertices x 3 / row
    # sel_ref          : (384, 128) bf16 VMEM -- constant 0/1 group-sum matrix
    # out_ref          : (1, 1, 128) f32 VMEM -- per-parallel-slice partials
    # acc_ref          : (8, 128) f32 VMEM scratch accumulator (one vreg tile)
    p = pl.program_id(0)               # parallel slice (v7x 2-TC split)
    j = pl.program_id(1)               # sequential reduction step
    block_idx = p * nj + j             # UNCLAMPED global row-block index

    @pl.when(j == 0)
    def _init():
        acc_ref[...] = jnp.zeros_like(acc_ref)

    d = pred_ref[...].astype(jnp.float32) - gt_ref[...].astype(jnp.float32)
    sq = d * d                                            # VPU, dense vregs

    # Per-vertex sum of the 3 interleaved squared components on the MXU.
    # bf16 hi/lo split keeps ~f32 accuracy with plain bf16 MXU passes.
    hi = sq.astype(jnp.bfloat16)
    lo = (sq - hi.astype(jnp.float32)).astype(jnp.bfloat16)
    sel = sel_ref[...]                                    # (384, 128) 0/1
    ssq = (jnp.dot(hi, sel, preferred_element_type=jnp.float32) +
           jnp.dot(lo, sel, preferred_element_type=jnp.float32))  # (TR, 128)

    dist = jnp.sqrt(ssq)                                  # EUP, per-row
    n_sub = block_rows // 8                               # static

    @pl.when(block_idx < last_block)                      # fully in-range block
    def _acc_fast():
        acc_ref[...] += dist.reshape(n_sub, 8, _VERTS_PER_ROW).sum(axis=0)

    @pl.when(block_idx >= last_block)                     # partial / clamped tail
    def _acc_masked():
        # Mask is a *select* applied per-row BEFORE the cross-row reduction so
        # garbage (NaN/Inf) in DMA-overhang rows never mixes into valid rows.
        # Uses the UNCLAMPED global row index so duplicated clamped blocks
        # contribute exactly zero.
        row0 = block_idx * block_rows
        rows = row0 + jax.lax.broadcasted_iota(jnp.int32, dist.shape, 0)
        masked = jnp.where(rows < total_rows, dist, 0.0)
        acc_ref[...] += masked.reshape(n_sub, 8, _VERTS_PER_ROW).sum(axis=0)

    @pl.when(j == nj - 1)
    def _finalize():
        # Single-vreg sublane reduce; cross-lane sum done in JAX outside.
        out_ref[...] = jnp.sum(acc_ref[...], axis=0, keepdims=True)[None]


# ----------------------------------------------------------------------------
# Wrapper
# ----------------------------------------------------------------------------
def geometric_mean_euclidean_loss(predict_points, gt_points, *,
                                  block_rows=4096, num_parallel=None):
    """Mean Euclidean distance between (..., 3) point sets via Pallas."""
    if predict_points.shape != gt_points.shape:
        raise ValueError("predict_points / gt_points shape mismatch")
    if predict_points.shape[-1] != 3:
        raise ValueError("last dim must be 3 (xyz)")

    n_points = math.prod(predict_points.shape[:-1])
    total = n_points * 3

    # bf16 inputs stream as bf16 (half the HBM bytes); everything else as f32.
    if (predict_points.dtype == jnp.bfloat16 and
            gt_points.dtype == jnp.bfloat16):
        stream_dtype, sub_mult = jnp.bfloat16, 16         # bf16 sublane packing
    else:
        stream_dtype, sub_mult = jnp.float32, 8

    pred_flat = predict_points.astype(stream_dtype).reshape(-1)
    gt_flat = gt_points.astype(stream_dtype).reshape(-1)

    # Fast path: free reshape when already row-aligned.  Otherwise zero-pad
    # both flats (padded vertices are zero in BOTH inputs -> distance 0); also
    # guarantee at least one full sublane tile of rows.
    min_len = max(_round_up(total, _LANES), sub_mult * _LANES)
    if min_len != total:
        pred_flat = jnp.pad(pred_flat, (0, min_len - total))
        gt_flat = jnp.pad(gt_flat, (0, min_len - total))

    rows = min_len // _LANES
    pred2d = pred_flat.reshape(rows, _LANES)
    gt2d = gt_flat.reshape(rows, _LANES)

    # ---- chip-aware grid / tile selection ----------------------------------
    n_par_req = (int(num_parallel) if num_parallel is not None
                 else _default_num_parallel())
    n_par_req = max(1, n_par_req)
    # Keep every TensorCore busy as long as each slice gets >= one sublane tile.
    n_par = n_par_req if rows >= sub_mult * n_par_req else 1

    in_bytes = jnp.dtype(stream_dtype).itemsize
    # Keep double-buffered input footprint under ~48 MiB regardless of caller.
    max_tr_vmem = ((48 << 20) // (2 * 2 * _LANES * in_bytes) // sub_mult) * sub_mult
    tr = min(_round_up(pl.cdiv(rows, n_par), sub_mult),
             _round_up(max(int(block_rows), sub_mult), sub_mult),
             (rows // sub_mult) * sub_mult,                # never exceed array
             max(max_tr_vmem, sub_mult))
    nj = pl.cdiv(rows, n_par * tr)
    last_block = max(pl.cdiv(rows, tr) - 1, 0)

    # Explicit VMEM budget so big tiles also compile on v5e's 16 MiB scoped
    # default (two inputs x two pipeline buffers dominate); capped below v7x's
    # 64 MiB physical VMEM.
    vmem_est = (2 * 2 * tr * _LANES * in_bytes             # inputs, 2 buffers
                + 2 * _LANES * _VERTS_PER_ROW * 2          # sel (bf16), 2 bufs
                + 8 * _VERTS_PER_ROW * 4                   # (8,128) accumulator
                + 2 * _VERTS_PER_ROW * 4)                  # output block
    vmem_limit = int(min(max(int(vmem_est * 1.3) + (4 << 20), 32 << 20),
                         60 << 20))

    # Constant 0/1 group-sum matrix: sel[l, v] = 1 iff lane l is a coord of
    # vertex v.  Fetched once (constant index_map), lives in VMEM.
    sel = (jnp.arange(_LANES, dtype=jnp.int32)[:, None] // 3 ==
           jnp.arange(_VERTS_PER_ROW, dtype=jnp.int32)[None, :]
           ).astype(jnp.bfloat16)

    def row_block_map(p, j):
        # Clamp so a fully out-of-range tail block re-reads the last real
        # block instead of running off the array; its rows are masked (with
        # the UNCLAMPED index) inside the kernel.
        return (jnp.minimum(p * nj + j, last_block), 0)

    kernel = functools.partial(_dist_sum_kernel, nj=nj, block_rows=tr,
                               total_rows=rows, last_block=last_block)

    partial_sums = pl.pallas_call(
        kernel,
        out_shape=jax.ShapeDtypeStruct((n_par, 1, _VERTS_PER_ROW), jnp.float32),
        grid_spec=pltpu.PrefetchScalarGridSpec(
            num_scalar_prefetch=0,
            grid=(n_par, nj),
            in_specs=[
                pl.BlockSpec((tr, _LANES), row_block_map),
                pl.BlockSpec((tr, _LANES), row_block_map),
                pl.BlockSpec((_LANES, _VERTS_PER_ROW), lambda p, j: (0, 0)),
            ],
            out_specs=pl.BlockSpec((1, 1, _VERTS_PER_ROW),
                                   lambda p, j: (p, 0, 0)),
            scratch_shapes=[pltpu.VMEM((8, _VERTS_PER_ROW), jnp.float32)],
        ),
        compiler_params=pltpu.CompilerParams(
            dimension_semantics=("parallel", "arbitrary"),
            vmem_limit_bytes=vmem_limit),
    )(pred2d, gt2d, sel)

    return jnp.sum(partial_sums) / jnp.float32(n_points)


class GeometricMeanEuclideanLoss:
    """JAX/Pallas port of Geometric_Mean_Euclidean_Loss."""

    def __init__(self, block_rows=4096, num_parallel=None):
        self.block_rows = block_rows
        self.num_parallel = num_parallel

    def __call__(self, predict_points, gt_points):
        return geometric_mean_euclidean_loss(
            predict_points, gt_points,
            block_rows=self.block_rows, num_parallel=self.num_parallel)


# ----------------------------------------------------------------------------
# Pure-JAX reference (mirrors the PyTorch forward exactly)
# ----------------------------------------------------------------------------
def _reference_loss(predict_points, gt_points):
    d = predict_points.astype(jnp.float32) - gt_points.astype(jnp.float32)
    return jnp.sqrt(jnp.sum(d * d, axis=2)).mean()


if __name__ == "__main__":
    key = jax.random.PRNGKey(0)

    # Deterministic cases: multi-step grid using both parallel slices, the
    # default big-tile / chip-aware path, the padded + masked tail path, the
    # bf16 streaming path, and a tiny row-padded input.
    cases = [
        ((2, 4096, 3), jnp.float32, dict(block_rows=8, num_parallel=2)),
        ((2, 4096, 3), jnp.float32, dict()),
        ((2, 833, 3), jnp.float32, dict(block_rows=8, num_parallel=2)),
        ((2, 4096, 3), jnp.bfloat16, dict(block_rows=16, num_parallel=2)),
        ((1, 40, 3), jnp.float32, dict()),
    ]

    for shape, dtype, kwargs in cases:
        key, kp, kg = jax.random.split(key, 3)
        pred = jax.random.normal(kp, shape, dtype=dtype)
        gt = jax.random.normal(kg, shape, dtype=dtype)

        loss = GeometricMeanEuclideanLoss(**kwargs)(pred, gt)
        loss = jax.block_until_ready(loss)

        ref = jax.block_until_ready(_reference_loss(pred, gt))
        assert jnp.allclose(loss, ref, rtol=1e-4, atol=1e-6), (
            shape, dtype, kwargs, loss, ref)

    print("KERNEL_OK")
</pallas_src>

<mosaic_0001>
module attributes {stable_mosaic.version = 11 : i64} {
  func.func @_dist_sum_kernel(%arg0: i32, %arg1: i32, %arg2: memref<8x384xf32, #tpu.memory_space<vmem>>, %arg3: memref<8x384xf32, #tpu.memory_space<vmem>>, %arg4: memref<384x128xbf16, #tpu.memory_space<vmem>>, %arg5: memref<1x1x128xf32, #tpu.memory_space<vmem>>, %arg6: memref<8x128xf32, #tpu.memory_space<vmem>>) attributes {dimension_semantics = [#tpu.dimension_semantics<parallel>, #tpu.dimension_semantics<arbitrary>], iteration_bounds = array<i64: 2, 4>, scalar_prefetch = 0 : i64, scratch_operands = 1 : i64, tpu.core_type = #tpu.core_type<tc>, window_params = [{transform_indices = @transform_0, window_bounds = array<i64: 8, 384>}, {transform_indices = @transform_1, window_bounds = array<i64: 8, 384>}, {pipeline_mode = #tpu.pipeline_mode<synchronous>, transform_indices = @transform_2, window_bounds = array<i64: 384, 128>}, {transform_indices = @transform_3, window_bounds = array<i64: 1, 1, 128>}]} {
    %c4_i32 = arith.constant 4 : i32
    %0 = arith.muli %arg0, %c4_i32 : i32
    %1 = arith.addi %0, %arg1 : i32
    %c0_i32 = arith.constant 0 : i32
    %2 = arith.cmpi eq, %arg1, %c0_i32 : i32
    %3 = arith.extui %2 : i1 to i32
    %c0_i32_0 = arith.constant 0 : i32
    %4 = arith.cmpi ne, %3, %c0_i32_0 : i32
    scf.if %4 {
      %cst_11 = arith.constant 0.000000e+00 : f32
      %27 = vector.broadcast %cst_11 : f32 to vector<8x128xf32>
      %c0_12 = arith.constant 0 : index
      %c0_13 = arith.constant 0 : index
      %28 = vector.load %arg6[%c0_12, %c0_13] : memref<8x128xf32, #tpu.memory_space<vmem>>, vector<8x128xf32>
      tpu.vector_store %arg6[%c0_12, %c0_13], %27 {strides = array<i32>} : memref<8x128xf32, #tpu.memory_space<vmem>>, vector<8x128xf32>,
    } else {
    }
    %c0 = arith.constant 0 : index
    %c0_1 = arith.constant 0 : index
    %5 = vector.load %arg2[%c0, %c0_1] : memref<8x384xf32, #tpu.memory_space<vmem>>, vector<8x384xf32>
    %c0_2 = arith.constant 0 : index
    %c0_3 = arith.constant 0 : index
    %6 = vector.load %arg3[%c0_2, %c0_3] : memref<8x384xf32, #tpu.memory_space<vmem>>, vector<8x384xf32>
    %7 = arith.subf %5, %6 : vector<8x384xf32>
    %8 = arith.mulf %7, %7 : vector<8x384xf32>
    %9 = arith.truncf %8 : vector<8x384xf32> to vector<8x384xbf16>
    %10 = arith.extf %9 : vector<8x384xbf16> to vector<8x384xf32>
    %11 = arith.subf %8, %10 : vector<8x384xf32>
    %12 = arith.truncf %11 : vector<8x384xf32> to vector<8x384xbf16>
    %c0_4 = arith.constant 0 : index
    %c0_5 = arith.constant 0 : index
    %13 = vector.load %arg4[%c0_4, %c0_5] : memref<384x128xbf16, #tpu.memory_space<vmem>>, vector<384x128xbf16>
    %cst = arith.constant dense<0.000000e+00> : vector<8x128xf32>
    %14 = tpu.matmul %9, %13, %cst {dimension_numbers = #tpu.dot_dimension_numbers<[1], [0], [0], [1], [0, 0, 1, 1], [], []>} : vector<8x384xbf16>, vector<384x128xbf16>, vector<8x128xf32> -> vector<8x128xf32>
    %cst_6 = arith.constant dense<0.000000e+00> : vector<8x128xf32>
    %15 = tpu.matmul %12, %13, %cst_6 {dimension_numbers = #tpu.dot_dimension_numbers<[1], [0], [0], [1], [0, 0, 1, 1], [], []>} : vector<8x384xbf16>, vector<384x128xbf16>, vector<8x128xf32> -> vector<8x128xf32>
    %16 = arith.addf %14, %15 : vector<8x128xf32>
    %17 = math.sqrt %16 : vector<8x128xf32>
    %c7_i32 = arith.constant 7 : i32
    %18 = arith.cmpi slt, %1, %c7_i32 : i32
    %19 = arith.extui %18 : i1 to i32
    %c0_i32_7 = arith.constant 0 : i32
    %20 = arith.cmpi ne, %19, %c0_i32_7 : i32
    scf.if %20 {
      %c0_11 = arith.constant 0 : index
      %c0_12 = arith.constant 0 : index
      %27 = vector.load %arg6[%c0_11, %c0_12] : memref<8x128xf32, #tpu.memory_space<vmem>>, vector<8x128xf32>
      %28 = vector.shape_cast %17 : vector<8x128xf32> to vector<1x8x128xf32>
      %cst_13 = arith.constant dense<0.000000e+00> : vector<8x128xf32>
      %29 = vector.multi_reduction <add>, %28, %cst_13 [0] : vector<1x8x128xf32> to vector<8x128xf32>
      %30 = arith.addf %27, %29 : vector<8x128xf32>
      %c0_14 = arith.constant 0 : index
      %c0_15 = arith.constant 0 : index
      %31 = vector.load %arg6[%c0_14, %c0_15] : memref<8x128xf32, #tpu.memory_space<vmem>>, vector<8x128xf32>
      tpu.vector_store %arg6[%c0_14, %c0_15], %30 {strides = array<i32>} : memref<8x128xf32, #tpu.memory_space<vmem>>, vector<8x128xf32>,
    } else {
    }
    %c7_i32_8 = arith.constant 7 : i32
    %21 = arith.cmpi sge, %1, %c7_i32_8 : i32
    %22 = arith.extui %21 : i1 to i32
    %c0_i32_9 = arith.constant 0 : i32
    %23 = arith.cmpi ne, %22, %c0_i32_9 : i32
    scf.if %23 {
      %c8_i32 = arith.constant 8 : i32
      %27 = arith.muli %1, %c8_i32 : i32
      %28 = tpu.iota {dimensions = array<i32: 0>} : vector<8x128xi32>
      %29 = vector.broadcast %27 : i32 to vector<8x128xi32>
      %30 = arith.addi %29, %28 : vector<8x128xi32>
      %c64_i32 = arith.constant 64 : i32
      %31 = vector.broadcast %c64_i32 : i32 to vector<8x128xi32>
      %32 = arith.cmpi slt, %30, %31 : vector<8x128xi32>
      %cst_11 = arith.constant 0.000000e+00 : f32
      %33 = vector.broadcast %cst_11 : f32 to vector<8x128xf32>
      %34 = arith.select %32, %17, %33 : vector<8x128xi1>, vector<8x128xf32>
      %c0_12 = arith.constant 0 : index
      %c0_13 = arith.constant 0 : index
      %35 = vector.load %arg6[%c0_12, %c0_13] : memref<8x128xf32, #tpu.memory_space<vmem>>, vector<8x128xf32>
      %36 = vector.shape_cast %34 : vector<8x128xf32> to vector<1x8x128xf32>
      %cst_14 = arith.constant dense<0.000000e+00> : vector<8x128xf32>
      %37 = vector.multi_reduction <add>, %36, %cst_14 [0] : vector<1x8x128xf32> to vector<8x128xf32>
      %38 = arith.addf %35, %37 : vector<8x128xf32>
      %c0_15 = arith.constant 0 : index
      %c0_16 = arith.constant 0 : index
      %39 = vector.load %arg6[%c0_15, %c0_16] : memref<8x128xf32, #tpu.memory_space<vmem>>, vector<8x128xf32>
      tpu.vector_store %arg6[%c0_15, %c0_16], %38 {strides = array<i32>} : memref<8x128xf32, #tpu.memory_space<vmem>>, vector<8x128xf32>,
    } else {
    }
    %c3_i32 = arith.constant 3 : i32
    %24 = arith.cmpi eq, %arg1, %c3_i32 : i32
    %25 = arith.extui %24 : i1 to i32
    %c0_i32_10 = arith.constant 0 : i32
    %26 = arith.cmpi ne, %25, %c0_i32_10 : i32
    scf.if %26 {
      %c0_11 = arith.constant 0 : index
      %c0_12 = arith.constant 0 : index
      %27 = vector.load %arg6[%c0_11, %c0_12] : memref<8x128xf32, #tpu.memory_space<vmem>>, vector<8x128xf32>
      %cst_13 = arith.constant dense<0.000000e+00> : vector<128xf32>
      %28 = vector.multi_reduction <add>, %27, %cst_13 [0] : vector<8x128xf32> to vector<128xf32>
      %29 = vector.shape_cast %28 : vector<128xf32> to vector<1x128xf32>
      %30 = vector.shape_cast %29 : vector<1x128xf32> to vector<1x1x128xf32>
      %c0_14 = arith.constant 0 : index
      %c0_15 = arith.constant 0 : index
      %c0_16 = arith.constant 0 : index
      %31 = vector.load %arg5[%c0_14, %c0_15, %c0_16] : memref<1x1x128xf32, #tpu.memory_space<vmem>>, vector<1x1x128xf32>
      tpu.vector_store %arg5[%c0_14, %c0_15, %c0_16], %30 {strides = array<i32>} : memref<1x1x128xf32, #tpu.memory_space<vmem>>, vector<1x1x128xf32>,
    } else {
    }
    return
  }
  func.func @transform_0(%arg0: i32, %arg1: i32) -> (i32, i32) {
    %c4_i32 = arith.constant 4 : i32
    %0 = arith.muli %arg0, %c4_i32 : i32
    %1 = arith.addi %0, %arg1 : i32
    %c7_i32 = arith.constant 7 : i32
    %2 = arith.minsi %1, %c7_i32 : i32
    %c0_i32 = arith.constant 0 : i32
    %c0_i32_0 = arith.constant 0 : i32
    return %2, %c0_i32 : i32, i32
  }
  func.func @transform_1(%arg0: i32, %arg1: i32) -> (i32, i32) {
    %c4_i32 = arith.constant 4 : i32
    %0 = arith.muli %arg0, %c4_i32 : i32
    %1 = arith.addi %0, %arg1 : i32
    %c7_i32 = arith.constant 7 : i32
    %2 = arith.minsi %1, %c7_i32 : i32
    %c0_i32 = arith.constant 0 : i32
    %c0_i32_0 = arith.constant 0 : i32
    return %2, %c0_i32 : i32, i32
  }
  func.func @transform_2(%arg0: i32, %arg1: i32) -> (i32, i32) {
    %c0_i32 = arith.constant 0 : i32
    %c0_i32_0 = arith.constant 0 : i32
    %c0_i32_1 = arith.constant 0 : i32
    return %c0_i32, %c0_i32_0 : i32, i32
  }
  func.func @transform_3(%arg0: i32, %arg1: i32) -> (i32, i32, i32) {
    %c0_i32 = arith.constant 0 : i32
    %c0_i32_0 = arith.constant 0 : i32
    %c0_i32_1 = arith.constant 0 : i32
    return %arg0, %c0_i32, %c0_i32_0 : i32, i32, i32
  }
}

</mosaic_0001>

<llo_original>
// kernel: tpu_custom_call.1
$region0: #{tpu_custom_call.1}
  #allocation0 [shape = 'u32[]', space=smem, size = 0x4, offset = 0x4, fixed_abs, tag = 'smem constant byte address 0x4 - core index']
  #allocation1 [shape = 'u32[72,128]{1,0:T(1,128)}', space=vmem, size = 0x9000, scoped, tag = 'internal scratch']
  #allocation2 [shape = 'f32[8,128]{1,0:T(8,128)}', space=vmem, size = 0x1000, scoped, tag = 'scratch operand']
  %s0 = inlined_call_operand.hbm [shape: f32[64,384], index: 0, kind: input, shape index: {}]
  %s1 = inlined_call_operand.hbm [shape: f32[64,384], index: 1, kind: input, shape index: {}]
  %s2 = inlined_call_operand.hbm [shape: bf16[384,128], index: 2, kind: input, shape index: {}]
  %s3 = inlined_call_operand.hbm [shape: f32[2,1,128], index: 3, kind: output, shape index: {}]
  %s4 = sld [smem:[#allocation0]]
  $region73: #{tpu_custom_call.1} parent=0
    _
  %s6 = ssub.s32 1, %s4
  %s7 = scalar_select 0, %s6, %s4
  $region1: #{tpu_custom_call.1} parent=0
    #allocation3 [shape = 'u8[24576]{0}', space=vmem, size = 0x6000, scoped, tag = 'input window, operand 0']
    #allocation4 [shape = 's32[2]{0}', space=sflag, size = 0x8, scoped, tag = 'scoped memory for tpu_custom_call.1']
    #allocation5 [shape = 's32[2]{0}', space=sflag, size = 0x8, scoped, tag = 'scoped memory for tpu_custom_call.1']
    #allocation6 [shape = 'u8[24576]{0}', space=vmem, size = 0x6000, scoped, tag = 'input window, operand 1']
    #allocation7 [shape = 's32[2]{0}', space=sflag, size = 0x8, scoped, tag = 'scoped memory for tpu_custom_call.1']
    #allocation8 [shape = 'u8[98304]{0}', space=vmem, size = 0x18000, scoped, tag = 'input window, operand 2, single buffered']
    #allocation9 [shape = 'u8[1024]{0}', space=vmem, size = 0x400, scoped, tag = 'output window, operand 0']
    %8 = vsyncpa [#allocation4], 0
    %s9 = scalar_lea.sflag [#allocation4], 1
    %10 = vsyncpa %s9, 0
    %11 = vsyncpa [#allocation7], 0
    %s12 = scalar_lea.sflag [#allocation7], 1
    %13 = vsyncpa %s12, 0
    %14 = vsyncpa [#allocation5], 0
    %s15 = scalar_lea.sflag [#allocation5], 1
    %16 = vsyncpa %s15, 0
    loop: start=0, step=1, limit=10
    $region2: #{tpu_custom_call.1} parent=1 // loop_pre_header
      _
    $region3: #{tpu_custom_call.1} parent=1 // loop_header
      %s18 = sphi 0, %s22
      %p19 = scmp.ge.s32.totalorder %s18, 10
      %s25 = sphi 0, %s37
      %s26 = sphi 0, %s33
      %s27 = sphi 0, %s25
      %s28 = sphi 0, %s26
      %s29 = sphi 0, %s27
      %s30 = sphi 0, %s28
      %s48 = sphi 0, %s50
      %s51 = sphi 0, %s48
      %s52 = sphi 0, %s51
      %s68 = sphi 0, %s52
      %s82 = sphi 0, %s84
      %s85 = sphi 0, %s82
      %s86 = sphi 0, %s85
      %s102 = sphi 0, %s86
      %s106 = sphi 0, %s106
      %s108 = sphi 0, %s106
      %s109 = sphi 0, %s108
      %s123 = sphi 0, %s109
      %s129 = sphi 0, %s131
      %s132 = sphi 0, %s129
      %s133 = sphi 0, %s132
      %s149 = sphi 0, %s133
    $region4: #{tpu_custom_call.1} parent=1 // loop_header_branch
      %21 = sbr.rel (%p19) target = $region8
    $region5: #{tpu_custom_call.1} parent=1 // loop_body
      %s23 = ssub.s32 %s18, 1
      %s24 = ssub.s32 %s18, 2
      %s31 = sadd.s32 1, %s26
      %p32 = scmp.ge.s32.totalorder %s31, 4
      %s33 = scalar_select %p32, 0, %s31
      %s34 = sadd.s32 1, %s25
      %s35 = scalar_select %p32, %s34, %s25
      %p36 = scmp.ge.s32.totalorder %s35, 2
      %s37 = scalar_select %p36, 0, %s35
      %s38 = smul.u32 %s25, 4
      %s39 = sadd.s32 %s38, %s26
      %p40 = scmp.lt.s32.totalorder %s39, 7
      %s41 = scalar_select %p40, %s39, 7
      %s42 = smul.u32 %s37, 4
      %s43 = sadd.s32 %s42, %s33
      %p44 = scmp.lt.s32.totalorder %s43, 7
      %s45 = scalar_select %p44, %s43, 7
      %s46 = ssub.s32 %s41, %s45
      %p47 = scmp.eq.s32.totalorder %s46, 0
      %s49 = sadd.s32 %s48, 1
      %s50 = scalar_select %p47, %s48, %s49
      %p53 = pneg %p47
      %p54 = scmp.eq.s32.totalorder %s18, 7
      %p55 = por %p53, %p54
      %p56 = scmp.ne.s32.totalorder %s48, %s51
      %p57 = scmp.eq.s32.totalorder %s18, 0
      %p58 = por %p56, %p57
      %p59 = scmp.ne.s32.totalorder %s48, %s51
      %p60 = scmp.eq.s32.totalorder %s23, 7
      %p61 = por %p59, %p60
      %p62 = scmp.ne.s32.totalorder %s51, %s52
      %p63 = scmp.eq.s32.totalorder %s23, 0
      %p64 = por %p62, %p63
      %p65 = scmp.ne.s32.totalorder %s51, %s52
      %p66 = scmp.eq.s32.totalorder %s24, 7
      %p67 = por %p65, %p66
      %p69 = scmp.ne.s32.totalorder %s52, %s68
      %p70 = scmp.eq.s32.totalorder %s24, 0
      %p71 = por %p69, %p70
      %s72 = smul.u32 %s25, 4
      %s73 = sadd.s32 %s72, %s26
      %p74 = scmp.lt.s32.totalorder %s73, 7
      %s75 = scalar_select %p74, %s73, 7
      %s76 = smul.u32 %s37, 4
      %s77 = sadd.s32 %s76, %s33
      %p78 = scmp.lt.s32.totalorder %s77, 7
      %s79 = scalar_select %p78, %s77, 7
      %s80 = ssub.s32 %s75, %s79
      %p81 = scmp.eq.s32.totalorder %s80, 0
      %s83 = sadd.s32 %s82, 1
      %s84 = scalar_select %p81, %s82, %s83
      %p87 = pneg %p81
      %p88 = scmp.eq.s32.totalorder %s18, 7
      %p89 = por %p87, %p88
      %p90 = scmp.ne.s32.totalorder %s82, %s85
      %p91 = scmp.eq.s32.totalorder %s18, 0
      %p92 = por %p90, %p91
      %p93 = scmp.ne.s32.totalorder %s82, %s85
      %p94 = scmp.eq.s32.totalorder %s23, 7
      %p95 = por %p93, %p94
      %p96 = scmp.ne.s32.totalorder %s85, %s86
      %p97 = scmp.eq.s32.totalorder %s23, 0
      %p98 = por %p96, %p97
      %p99 = scmp.ne.s32.totalorder %s85, %s86
      %p100 = scmp.eq.s32.totalorder %s24, 7
      %p101 = por %p99, %p100
      %p103 = scmp.ne.s32.totalorder %s86, %s102
      %p104 = scmp.eq.s32.totalorder %s24, 0
      %p105 = por %p103, %p104
      %s107 = sadd.s32 %s106, 1
      %p110 = scmp.eq.s32.totalorder %s18, 7
      %p111 = scmp.ne.s32.totalorder %s106, %s108
      %p112 = scmp.eq.s32.totalorder %s18, 0
      %p113 = por %p111, %p112
      %p114 = scmp.ne.s32.totalorder %s106, %s108
      %p115 = scmp.eq.s32.totalorder %s23, 7
      %p116 = por %p114, %p115
      %p117 = scmp.ne.s32.totalorder %s108, %s109
      %p118 = scmp.eq.s32.totalorder %s23, 0
      %p119 = por %p117, %p118
      %p120 = scmp.ne.s32.totalorder %s108, %s109
      %p121 = scmp.eq.s32.totalorder %s24, 7
      %p122 = por %p120, %p121
      %p124 = scmp.ne.s32.totalorder %s109, %s123
      %p125 = scmp.eq.s32.totalorder %s24, 0
      %p126 = por %p124, %p125
      %s127 = ssub.s32 %s25, %s37
      %p128 = scmp.eq.s32.totalorder %s127, 0
      %s130 = sadd.s32 %s129, 1
      %s131 = scalar_select %p128, %s129, %s130
      %p134 = pneg %p128
      %p135 = scmp.eq.s32.totalorder %s18, 7
      %p136 = por %p134, %p135
      %p137 = scmp.ne.s32.totalorder %s129, %s132
      %p138 = scmp.eq.s32.totalorder %s18, 0
      %p139 = por %p137, %p138
      %p140 = scmp.ne.s32.totalorder %s129, %s132
      %p141 = scmp.eq.s32.totalorder %s23, 7
      %p142 = por %p140, %p141
      %p143 = scmp.ne.s32.totalorder %s132, %s133
      %p144 = scmp.eq.s32.totalorder %s23, 0
      %p145 = por %p143, %p144
      %p146 = scmp.ne.s32.totalorder %s132, %s133
      %p147 = scmp.eq.s32.totalorder %s24, 7
      %p148 = por %p146, %p147
      %p150 = scmp.ne.s32.totalorder %s133, %s149
      %p151 = scmp.eq.s32.totalorder %s24, 0
      %p152 = por %p150, %p151
      %p153 = scmp.le.s32.totalorder 1, %s18
      %p154 = scmp.lt.s32.totalorder %s18, 9
      %p155 = pnand %p153, %p154
      %p156 = pneg %p155
      // Predicated region
      $region9: #{tpu_custom_call.1} parent=5 // pred_check
        _
      $region10: #{tpu_custom_call.1} parent=5 // pred_check_branch
        %158 = sbr.rel (%p155) target = $region12
      $region11: #{tpu_custom_call.1} parent=5 // pred_region
        %s159 = ssub.s32 %s18, 1
        // Predicated region
        $region13: #{tpu_custom_call.1} parent=11 // pred_check
          %p160 = pneg %p119
        $region14: #{tpu_custom_call.1} parent=11 // pred_check_branch
          %162 = sbr.rel (%p160) target = $region16
        $region15: #{tpu_custom_call.1} parent=11 // pred_region
          %164 = vsyncadd [#allocation7], 0
          %s165 = sshll.u32 %s2, 4
          %s166 = int_to_ptr.hbm [resolvable:$true] %s165
          %s167 = sshll.u32 [#allocation8], 4
          %s168 = int_to_ptr.vmem [resolvable:$true] %s167
          %173 = dma.hbm_to_vmem [thread:$0]  %s166, 3072, %s168, [#allocation7], 64, 64, 4
        $region16: #{tpu_custom_call.1} parent=11 // pred_fallthru
          _
      $region12: #{tpu_custom_call.1} parent=5 // pred_fallthru
        _
      %p174 = scmp.lt.s32.totalorder %s18, 8
      // Predicated region
      $region17: #{tpu_custom_call.1} parent=5 // pred_check
        %p175 = pneg %p174
      $region18: #{tpu_custom_call.1} parent=5 // pred_check_branch
        %177 = sbr.rel (%p175) target = $region20
      $region19: #{tpu_custom_call.1} parent=5 // pred_region
        // Predicated region
        $region21: #{tpu_custom_call.1} parent=19 // pred_check
          %p178 = pneg %p58
        $region22: #{tpu_custom_call.1} parent=19 // pred_check_branch
          %180 = sbr.rel (%p178) target = $region24
        $region23: #{tpu_custom_call.1} parent=19 // pred_region
          %s181 = sand.u32 %s48, 1
          %s182 = scalar_lea.sflag [#allocation4], %s181
          %s183 = sand.u32 %s48, 1
          %s184 = smul.addr %s183, 24
          %s185 = scalar_lea.vmem [#allocation3], %s184
          %s186 = smul.u32 %s25, 4
          %s187 = sadd.s32 %s186, %s26
          %p188 = scmp.lt.s32.totalorder %s187, 7
          %s189 = scalar_select %p188, %s187, 7
          %191 = vsyncadd %s182, 0
          %s192 = smul.addr %s189, 3
          %s193 = smul.addr %s192, 8
          %s194 = scalar_lea.hbm %s0, %s193
          %s196 = sshll.u32 %s194, 4
          %s197 = int_to_ptr.hbm [resolvable:$true] %s196
          %s198 = sshll.u32 %s185, 4
          %s199 = int_to_ptr.vmem [resolvable:$true] %s198
          %201 = dma.hbm_to_vmem [thread:$0]  %s197, 384, %s199, %s182
        $region24: #{tpu_custom_call.1} parent=19 // pred_fallthru
          _
        // Predicated region
        $region25: #{tpu_custom_call.1} parent=19 // pred_check
          %p202 = pneg %p92
        $region26: #{tpu_custom_call.1} parent=19 // pred_check_branch
          %204 = sbr.rel (%p202) target = $region28
        $region27: #{tpu_custom_call.1} parent=19 // pred_region
          %s205 = sand.u32 %s18, 1
          %s206 = scalar_lea.sflag [#allocation7], %s205
          %s207 = sand.u32 %s82, 1
          %s208 = smul.addr %s207, 24
          %s209 = scalar_lea.vmem [#allocation6], %s208
          %s210 = smul.u32 %s25, 4
          %s211 = sadd.s32 %s210, %s26
          %p212 = scmp.lt.s32.totalorder %s211, 7
          %s213 = scalar_select %p212, %s211, 7
          %215 = vsyncadd %s206, 0
          %s216 = smul.addr %s213, 3
          %s217 = smul.addr %s216, 8
          %s218 = scalar_lea.hbm %s1, %s217
          %s220 = sshll.u32 %s218, 4
          %s221 = int_to_ptr.hbm [resolvable:$true] %s220
          %s222 = sshll.u32 %s209, 4
          %s223 = int_to_ptr.vmem [resolvable:$true] %s222
          %225 = dma.hbm_to_vmem [thread:$0]  %s221, 384, %s223, %s206
        $region28: #{tpu_custom_call.1} parent=19 // pred_fallthru
          _
      $region20: #{tpu_custom_call.1} parent=5 // pred_fallthru
        _
      %p226 = scmp.le.s32.totalorder 1, %s18
      %p227 = scmp.lt.s32.totalorder %s18, 9
      %p228 = pnand %p226, %p227
      %p229 = pneg %p228
      // Predicated region
      $region29: #{tpu_custom_call.1} parent=5 // pred_check
        _
      $region30: #{tpu_custom_call.1} parent=5 // pred_check_branch
        %231 = sbr.rel (%p228) target = $region32
      $region31: #{tpu_custom_call.1} parent=5 // pred_region
        %s232 = ssub.s32 %s18, 1
        %s233 = sand.u32 %s51, 1
        %s234 = scalar_lea.sflag [#allocation4], %s233
        %s235 = sand.u32 %s51, 1
        %s236 = smul.addr %s235, 24
        %s237 = scalar_lea.vmem [#allocation3], %s236
        // Predicated region
        $region33: #{tpu_custom_call.1} parent=31 // pred_check
          %p238 = pneg %p64
        $region34: #{tpu_custom_call.1} parent=31 // pred_check_branch
          %240 = sbr.rel (%p238) target = $region36
        $region35: #{tpu_custom_call.1} parent=31 // pred_region
          %242 = dma.done %s234, 384
        $region36: #{tpu_custom_call.1} parent=31 // pred_fallthru
          _
        %s243 = sand.u32 %s23, 1
        %s244 = scalar_lea.sflag [#allocation7], %s243
        %s245 = sand.u32 %s85, 1
        %s246 = smul.addr %s245, 24
        %s247 = scalar_lea.vmem [#allocation6], %s246
        // Predicated region
        $region37: #{tpu_custom_call.1} parent=31 // pred_check
          %p248 = pneg %p98
        $region38: #{tpu_custom_call.1} parent=31 // pred_check_branch
          %250 = sbr.rel (%p248) target = $region40
        $region39: #{tpu_custom_call.1} parent=31 // pred_region
          %252 = dma.done %s244, 384
        $region40: #{tpu_custom_call.1} parent=31 // pred_fallthru
          _
        // Predicated region
        $region41: #{tpu_custom_call.1} parent=31 // pred_check
          %p253 = pneg %p119
        $region42: #{tpu_custom_call.1} parent=31 // pred_check_branch
          %255 = sbr.rel (%p253) target = $region44
        $region43: #{tpu_custom_call.1} parent=31 // pred_region
          %257 = dma.done [#allocation7], 3072
        $region44: #{tpu_custom_call.1} parent=31 // pred_fallthru
          _
        %s258 = sand.u32 %s51, 1
        %s259 = scalar_lea.sflag [#allocation4], %s258
        %s260 = sand.u32 %s51, 1
        %s261 = smul.addr %s260, 24
        %s262 = scalar_lea.vmem [#allocation3], %s261
        %p263 = pneg %p64
        %p264 = pneg %p61
        %s265 = sand.u32 %s23, 1
        %s266 = scalar_lea.sflag [#allocation7], %s265
        %s267 = sand.u32 %s85, 1
        %s268 = smul.addr %s267, 24
        %s269 = scalar_lea.vmem [#allocation6], %s268
        %p270 = pneg %p98
        %p271 = pneg %p95
        %p272 = pneg %p119
        %p273 = pneg %p116
        %p274 = pneg %p145
        %p275 = pneg %p142
        %s276 = sand.u32 %s132, 1
        %s277 = scalar_lea.sflag [#allocation5], %s276
        %s278 = sand.u32 %s132, 1
        %s279 = scalar_lea.vmem [#allocation9], %s278
        %s280 = smul.u32 %s27, 4
        %s281 = sadd.s32 %s280, %s28
        %p282 = scmp.lt.s32.totalorder %s281, 7
        %s283 = scalar_select %p282, %s281, 7
        %s284 = smul.u32 %s27, 4
        %s285 = sadd.s32 %s284, %s28
        %p286 = scmp.lt.s32.totalorder %s285, 7
        %s287 = scalar_select %p286, %s285, 7
        %s288 = smul.u32 %s27, 4
        %s289 = sadd.s32 %s288, %s28
        %p290 = scmp.eq.s32.totalorder %s28, 0
        // Predicated region
        $region45: #{tpu_custom_call.1} parent=31 // pred_check
          %p291 = pneg %p290
        $region46: #{tpu_custom_call.1} parent=31 // pred_check_branch
          %293 = sbr.rel (%p291) target = $region48
        $region47: #{tpu_custom_call.1} parent=31 // pred_region
          %294 = vst [vmem:[#allocation2] sm:$0xff] 0.0
        $region48: #{tpu_custom_call.1} parent=31 // pred_fallthru
          _
        %v295 = vld [vmem:[%s237] sm:$0xff]
        %v296 = vld [vmem:[%s237 + $0x8] sm:$0xff]
        %v297 = vld [vmem:[%s237 + $0x10] sm:$0xff]
        %v298 = vld [vmem:[%s247] sm:$0xff]
        %v299 = vld [vmem:[%s247 + $0x8] sm:$0xff]
        %v300 = vld [vmem:[%s247 + $0x10] sm:$0xff]
        %v301 = vsub.f32 %v295, %v298
        %v302 = vsub.f32 %v296, %v299
        %v303 = vsub.f32 %v297, %v300
        %v304 = vmul.f32 %v301, %v301
        %v305 = vmul.f32 %v302, %v302
        %v306 = vmul.f32 %v303, %v303
        %v307 = vpack.c.bf16 %v305, %v304
        %v308 = vpack.c.bf16 %v306, %v306
        %v309 = vunpack.c.l.bf16 %v307
        %v310 = vunpack.c.h.bf16 %v307
        %v311 = vunpack.c.l.bf16 %v308
        %v312 = vsub.f32 %v304, %v309
        %v313 = vsub.f32 %v305, %v310
        %v314 = vsub.f32 %v306, %v311
        %v315 = vpack.c.bf16 %v312, %v312
        %v316 = vpack.c.bf16 %v313, %v313
        %v317 = vpack.c.bf16 %v314, %v314
        %v318 = vld [vmem:[#allocation8] sm:$0xf]
        %v319 = vld [vmem:[#allocation8 + $0x4] sm:$0xf]
        %v320 = vld [vmem:[#allocation8 + $0x8] sm:$0xf]
        %v321 = vld [vmem:[#allocation8 + $0xc] sm:$0xf]
        %v322 = vld [vmem:[#allocation8 + $0x10] sm:$0xf]
        %v323 = vld [vmem:[#allocation8 + $0x14] sm:$0xf]
        %v324 = vld [vmem:[#allocation8 + $0x18] sm:$0xf]
        %v325 = vld [vmem:[#allocation8 + $0x1c] sm:$0xf]
        %v326 = vld [vmem:[#allocation8 + $0x20] sm:$0xf]
        %v327 = vld [vmem:[#allocation8 + $0x24] sm:$0xf]
        %v328 = vld [vmem:[#allocation8 + $0x28] sm:$0xf]
        %v329 = vld [vmem:[#allocation8 + $0x2c] sm:$0xf]
        %v330 = vld [vmem:[#allocation8 + $0x30] sm:$0xf]
        %v331 = vld [vmem:[#allocation8 + $0x34] sm:$0xf]
        %v332 = vld [vmem:[#allocation8 + $0x38] sm:$0xf]
        %v333 = vld [vmem:[#allocation8 + $0x3c] sm:$0xf]
        %v334 = vld [vmem:[#allocation8 + $0x40] sm:$0xf]
        %v335 = vld [vmem:[#allocation8 + $0x44] sm:$0xf]
        %v336 = vld [vmem:[#allocation8 + $0x48] sm:$0xf]
        %v337 = vld [vmem:[#allocation8 + $0x4c] sm:$0xf]
        %v338 = vld [vmem:[#allocation8 + $0x50] sm:$0xf]
        %v339 = vld [vmem:[#allocation8 + $0x54] sm:$0xf]
        %v340 = vld [vmem:[#allocation8 + $0x58] sm:$0xf]
        %v341 = vld [vmem:[#allocation8 + $0x5c] sm:$0xf]
        %v342 = vld [vmem:[#allocation8 + $0x60] sm:$0xf]
        %v343 = vld [vmem:[#allocation8 + $0x64] sm:$0xf]
        %v344 = vld [vmem:[#allocation8 + $0x68] sm:$0xf]
        %v345 = vld [vmem:[#allocation8 + $0x6c] sm:$0xf]
        %v346 = vld [vmem:[#allocation8 + $0x70] sm:$0xf]
        %v347 = vld [vmem:[#allocation8 + $0x74] sm:$0xf]
        %v348 = vld [vmem:[#allocation8 + $0x78] sm:$0xf]
        %v349 = vld [vmem:[#allocation8 + $0x7c] sm:$0xf]
        %v350 = vld [vmem:[#allocation8 + $0x80] sm:$0xf]
        %v351 = vld [vmem:[#allocation8 + $0x84] sm:$0xf]
        %v352 = vld [vmem:[#allocation8 + $0x88] sm:$0xf]
        %v353 = vld [vmem:[#allocation8 + $0x8c] sm:$0xf]
        %v354 = vld [vmem:[#allocation8 + $0x90] sm:$0xf]
        %v355 = vld [vmem:[#allocation8 + $0x94] sm:$0xf]
        %v356 = vld [vmem:[#allocation8 + $0x98] sm:$0xf]
        %v357 = vld [vmem:[#allocation8 + $0x9c] sm:$0xf]
        %v358 = vld [vmem:[#allocation8 + $0xa0] sm:$0xf]
        %v359 = vld [vmem:[#allocation8 + $0xa4] sm:$0xf]
        %v360 = vld [vmem:[#allocation8 + $0xa8] sm:$0xf]
        %v361 = vld [vmem:[#allocation8 + $0xac] sm:$0xf]
        %v362 = vld [vmem:[#allocation8 + $0xb0] sm:$0xf]
        %v363 = vld [vmem:[#allocation8 + $0xb4] sm:$0xf]
        %v364 = vld [vmem:[#allocation8 + $0xb8] sm:$0xf]
        %v365 = vld [vmem:[#allocation8 + $0xbc] sm:$0xf]
        %v414 = vunpack.c.l.b16 %v318
        %v415 = vunpack.c.l.b16 %v319
        %v416 = vunpack.c.l.b16 %v320
        %v417 = vunpack.c.l.b16 %v321
        %v418 = vunpack.c.l.b16 %v322
        %v419 = vunpack.c.l.b16 %v323
        %v420 = vunpack.c.l.b16 %v324
        %v421 = vunpack.c.l.b16 %v325
        %v422 = vunpack.c.l.b16 %v326
        %v423 = vunpack.c.l.b16 %v327
        %v424 = vunpack.c.l.b16 %v328
        %v425 = vunpack.c.l.b16 %v329
        %v426 = vunpack.c.l.b16 %v330
        %v427 = vunpack.c.l.b16 %v331
        %v428 = vunpack.c.l.b16 %v332
        %v429 = vunpack.c.l.b16 %v333
        %v430 = vunpack.c.l.b16 %v334
        %v431 = vunpack.c.l.b16 %v335
        %v432 = vunpack.c.l.b16 %v336
        %v433 = vunpack.c.l.b16 %v337
        %v434 = vunpack.c.l.b16 %v338
        %v435 = vunpack.c.l.b16 %v339
        %v436 = vunpack.c.l.b16 %v340
        %v437 = vunpack.c.l.b16 %v341
        %v438 = vunpack.c.l.b16 %v342
        %v439 = vunpack.c.l.b16 %v343
        %v440 = vunpack.c.l.b16 %v344
        %v441 = vunpack.c.l.b16 %v345
        %v442 = vunpack.c.l.b16 %v346
        %v443 = vunpack.c.l.b16 %v347
        %v444 = vunpack.c.l.b16 %v348
        %v445 = vunpack.c.l.b16 %v349
        %v446 = vunpack.c.l.b16 %v350
        %v447 = vunpack.c.l.b16 %v351
        %v448 = vunpack.c.l.b16 %v352
        %v449 = vunpack.c.l.b16 %v353
        %v450 = vunpack.c.l.b16 %v354
        %v451 = vunpack.c.l.b16 %v355
        %v452 = vunpack.c.l.b16 %v356
        %v453 = vunpack.c.l.b16 %v357
        %v454 = vunpack.c.l.b16 %v358
        %v455 = vunpack.c.l.b16 %v359
        %v456 = vunpack.c.l.b16 %v360
        %v457 = vunpack.c.l.b16 %v361
        %v458 = vunpack.c.l.b16 %v362
        %v459 = vunpack.c.l.b16 %v363
        %v460 = vunpack.c.l.b16 %v364
        %v461 = vunpack.c.l.b16 %v365
        %v462 = vpack.c.b16 %v415, %v414
        %v463 = vpack.c.b16 %v417, %v416
        %v464 = vpack.c.b16 %v419, %v418
        %v465 = vpack.c.b16 %v421, %v420
        %v466 = vpack.c.b16 %v423, %v422
        %v467 = vpack.c.b16 %v425, %v424
        %v468 = vpack.c.b16 %v427, %v426
        %v469 = vpack.c.b16 %v429, %v428
        %v470 = vpack.c.b16 %v431, %v430
        %v471 = vpack.c.b16 %v433, %v432
        %v472 = vpack.c.b16 %v435, %v434
        %v473 = vpack.c.b16 %v437, %v436
        %v474 = vpack.c.b16 %v439, %v438
        %v475 = vpack.c.b16 %v441, %v440
        %v476 = vpack.c.b16 %v443, %v442
        %v477 = vpack.c.b16 %v445, %v444
        %v478 = vpack.c.b16 %v447, %v446
        %v479 = vpack.c.b16 %v449, %v448
        %v480 = vpack.c.b16 %v451, %v450
        %v481 = vpack.c.b16 %v453, %v452
        %v482 = vpack.c.b16 %v455, %v454
        %v483 = vpack.c.b16 %v457, %v456
        %v484 = vpack.c.b16 %v459, %v458
        %v485 = vpack.c.b16 %v461, %v460
        %510 = vmatpush.bf16.msra.mxu0 %v469
        %511 = vmatpush.bf16.msra.mxu0 %v468
        %512 = vmatpush.bf16.msra.mxu0 %v467
        %513 = vmatpush.bf16.msra.mxu0 %v466
        %514 = vmatpush.bf16.msra.mxu0 %v465
        %515 = vmatpush.bf16.msra.mxu0 %v464
        %516 = vmatpush.bf16.msra.mxu0 %v463
        %517 = vmatpush.bf16.msra.mxu0 %v462
        %518 = vmatmul.bf16.gmra.mxu0 %v315
        %v519 = vpop.f32.mrf.mxu0
        %v520 = vadd.f32 0.0, %v519
        %v521 = vpop.f32.mrf.mxu0
        %522 = vdwg.mxu0
        %523 = vmatpush.bf16.msra.mxu0 %v477
        %524 = vmatpush.bf16.msra.mxu0 %v476
        %525 = vmatpush.bf16.msra.mxu0 %v475
        %526 = vmatpush.bf16.msra.mxu0 %v474
        %527 = vmatpush.bf16.msra.mxu0 %v473
        %528 = vmatpush.bf16.msra.mxu0 %v472
        %529 = vmatpush.bf16.msra.mxu0 %v471
        %530 = vmatpush.bf16.msra.mxu0 %v470
        %531 = vmatmul.bf16.gmra.mxu0 %v316
        %v532 = vpop.f32.mrf.mxu0
        %v533 = vadd.f32 %v520, %v532
        %v534 = vpop.f32.mrf.mxu0
        %535 = vdwg.mxu0
        %536 = vmatpush.bf16.msra.mxu0 %v485
        %537 = vmatpush.bf16.msra.mxu0 %v484
        %538 = vmatpush.bf16.msra.mxu0 %v483
        %539 = vmatpush.bf16.msra.mxu0 %v482
        %540 = vmatpush.bf16.msra.mxu0 %v481
        %541 = vmatpush.bf16.msra.mxu0 %v480
        %542 = vmatpush.bf16.msra.mxu0 %v479
        %543 = vmatpush.bf16.msra.mxu0 %v478
        %544 = vmatmul.bf16.gmra.mxu0 %v317
        %v545 = vpop.f32.mrf.mxu0
        %v546 = vadd.f32 %v533, %v545
        %v547 = vpop.f32.mrf.mxu0
        %548 = vdwg.mxu0
        %v551 = vunpack.c.l.b16 %v307
        %v552 = vunpack.c.h.b16 %v307
        %v553 = vunpack.c.l.b16 %v308
        %v554 = vpack.c.b16 %v551, %v551
        %v555 = vpack.c.b16 %v552, %v552
        %v556 = vpack.c.b16 %v553, %v553
        %560 = vmatpush.bf16.msra.mxu0 %v469
        %561 = vmatpush.bf16.msra.mxu0 %v468
        %562 = vmatpush.bf16.msra.mxu0 %v467
        %563 = vmatpush.bf16.msra.mxu0 %v466
        %564 = vmatpush.bf16.msra.mxu0 %v465
        %565 = vmatpush.bf16.msra.mxu0 %v464
        %566 = vmatpush.bf16.msra.mxu0 %v463
        %567 = vmatpush.bf16.msra.mxu0 %v462
        %568 = vmatmul.bf16.gmra.mxu0 %v554
        %v569 = vpop.f32.mrf.mxu0
        %v570 = vadd.f32 %v546, %v569
        %v571 = vpop.f32.mrf.mxu0
        %572 = vdwg.mxu0
        %573 = vmatpush.bf16.msra.mxu0 %v477
        %574 = vmatpush.bf16.msra.mxu0 %v476
        %575 = vmatpush.bf16.msra.mxu0 %v475
        %576 = vmatpush.bf16.msra.mxu0 %v474
        %577 = vmatpush.bf16.msra.mxu0 %v473
        %578 = vmatpush.bf16.msra.mxu0 %v472
        %579 = vmatpush.bf16.msra.mxu0 %v471
        %580 = vmatpush.bf16.msra.mxu0 %v470
        %581 = vmatmul.bf16.gmra.mxu0 %v555
        %v582 = vpop.f32.mrf.mxu0
        %v583 = vadd.f32 %v570, %v582
        %v584 = vpop.f32.mrf.mxu0
        %585 = vdwg.mxu0
        %586 = vmatpush.bf16.msra.mxu0 %v485
        %587 = vmatpush.bf16.msra.mxu0 %v484
        %588 = vmatpush.bf16.msra.mxu0 %v483
        %589 = vmatpush.bf16.msra.mxu0 %v482
        %590 = vmatpush.bf16.msra.mxu0 %v481
        %591 = vmatpush.bf16.msra.mxu0 %v480
        %592 = vmatpush.bf16.msra.mxu0 %v479
        %593 = vmatpush.bf16.msra.mxu0 %v478
        %594 = vmatmul.bf16.gmra.mxu0 %v556
        %v595 = vpop.f32.mrf.mxu0
        %v596 = vadd.f32 %v583, %v595
        %v597 = vpop.f32.mrf.mxu0
        %598 = vdwg.mxu0
        %v599 = vrsqrt.pop %v596
        %v600 = vmul.f32 %v599, %v596
        %v601 = vmul.f32 %v600, %v599
        %v602 = vmul.f32 0.5, %v601
        %v603 = vsub.f32 1.5, %v602
        %v604 = vmul.f32 %v599, %v603
        %v605 = vmul.f32 %v596, %v604
        %vm606 = vcmp.eq.f32.partialorder %v596, inf
        %v607 = vsel %vm606, %v596, %v605
        %vm608 = vcmp.eq.f32.partialorder %v596, 0.0
        %v609 = vand.u32 %v596, 2147483648
        %v610 = vsel %vm608, %v609, %v607
        %p611 = scmp.lt.s32.totalorder %s289, 7
        // Predicated region
        $region49: #{tpu_custom_call.1} parent=31 // pred_check
          %p612 = pneg %p611
        $region50: #{tpu_custom_call.1} parent=31 // pred_check_branch
          %614 = sbr.rel (%p612) target = $region52
        $region51: #{tpu_custom_call.1} parent=31 // pred_region
          %v615 = vld [vmem:[#allocation2] sm:$0xff]
          %v616 = vadd.f32 %v610, 0.0
          %v617 = vadd.f32 %v615, %v616
          %618 = vst [vmem:[#allocation2] sm:$0xff] %v617
        $region52: #{tpu_custom_call.1} parent=31 // pred_fallthru
          _
        %p619 = scmp.ge.s32.totalorder %s289, 7
        // Predicated region
        $region53: #{tpu_custom_call.1} parent=31 // pred_check
          %p620 = pneg %p619
        $region54: #{tpu_custom_call.1} parent=31 // pred_check_branch
          %622 = sbr.rel (%p620) target = $region56
        $region55: #{tpu_custom_call.1} parent=31 // pred_region
          %s623 = smul.u32 %s289, 8
          %v624 = vlaneseq
          %v625 = vshrl.u32 %v624, 7
          %v626 = vstv %s623
          %v627 = vadd.s32 %v626, %v625
          %vm628 = vcmp.lt.s32.totalorder %v627, 64
          %v629 = vsel %vm628, %v610, 0.0
          %v630 = vld [vmem:[#allocation2] sm:$0xff]
          %v631 = vadd.f32 %v629, 0.0
          %v632 = vadd.f32 %v630, %v631
          %633 = vst [vmem:[#allocation2] sm:$0xff] %v632
        $region56: #{tpu_custom_call.1} parent=31 // pred_fallthru
          _
        %p634 = scmp.eq.s32.totalorder %s28, 3
        // Predicated region
        $region57: #{tpu_custom_call.1} parent=31 // pred_check
          %p635 = pneg %p634
        $region58: #{tpu_custom_call.1} parent=31 // pred_check_branch
          %637 = sbr.rel (%p635) target = $region60
        $region59: #{tpu_custom_call.1} parent=31 // pred_region
          %v638 = vld [vmem:[#allocation2] sm:$0xff]
          %v639 = vrot.slane %v638, 4
          %v640 = vadd.f32 %v638, %v639
          %v641 = vrot.slane %v640, 2
          %v642 = vadd.f32 %v640, %v641
          %v643 = vrot.slane %v642, 1
          %v644 = vadd.f32 %v642, %v643
          %645 = vst [vmem:[%s279] sm:$0x1] %v644
        $region60: #{tpu_custom_call.1} parent=31 // pred_fallthru
          _
        %s646 = sand.u32 %s132, 1
        %s647 = scalar_lea.sflag [#allocation5], %s646
        %s648 = sand.u32 %s132, 1
        %s649 = scalar_lea.vmem [#allocation9], %s648
        // Predicated region
        $region61: #{tpu_custom_call.1} parent=31 // pred_check
          %p650 = pneg %p142
        $region62: #{tpu_custom_call.1} parent=31 // pred_check_branch
          %652 = sbr.rel (%p650) target = $region64
        $region63: #{tpu_custom_call.1} parent=31 // pred_region
          %654 = vsyncadd %s647, 0
          %s655 = scalar_lea.hbm %s3, %s27
          %s657 = sshll.u32 %s649, 4
          %s658 = int_to_ptr.vmem [resolvable:$true] %s657
          %s659 = sshll.u32 %s655, 4
          %s660 = int_to_ptr.hbm [resolvable:$true] %s659
          %662 = dma.vmem_to_hbm [thread:$0]  %s658, 16, %s660, %s647
        $region64: #{tpu_custom_call.1} parent=31 // pred_fallthru
          _
      $region32: #{tpu_custom_call.1} parent=5 // pred_fallthru
        _
      %p663 = scmp.le.s32.totalorder 2, %s18
      // Predicated region
      $region65: #{tpu_custom_call.1} parent=5 // pred_check
        %p664 = pneg %p663
      $region66: #{tpu_custom_call.1} parent=5 // pred_check_branch
        %666 = sbr.rel (%p664) target = $region68
      $region67: #{tpu_custom_call.1} parent=5 // pred_region
        %s667 = ssub.s32 %s18, 2
        // Predicated region
        $region69: #{tpu_custom_call.1} parent=67 // pred_check
          %p668 = pneg %p148
        $region70: #{tpu_custom_call.1} parent=67 // pred_check_branch
          %670 = sbr.rel (%p668) target = $region72
        $region71: #{tpu_custom_call.1} parent=67 // pred_region
          %s671 = sand.u32 %s133, 1
          %s672 = scalar_lea.sflag [#allocation5], %s671
          %s673 = sand.u32 %s133, 1
          %s674 = scalar_lea.vmem [#allocation9], %s673
          %676 = dma.done %s672, 16
        $region72: #{tpu_custom_call.1} parent=67 // pred_fallthru
          _
      $region68: #{tpu_custom_call.1} parent=5 // pred_fallthru
        _
    $region6: #{tpu_custom_call.1} parent=1 // loop_footer
      %s22 = sadd.s32 1, %s18
    $region7: #{tpu_custom_call.1} parent=1 // loop_footer_branch
      %17 = sbr.rel target = $region3
    $region8: #{tpu_custom_call.1} parent=1 // loop_exit
      _
    %677 = vsyncpa [#allocation4], 1
    %s678 = scalar_lea.sflag [#allocation4], 1
    %679 = vsyncpa %s678, 1
    %680 = vsyncpa [#allocation7], 1
    %s681 = scalar_lea.sflag [#allocation7], 1
    %682 = vsyncpa %s681, 1
    %683 = vsyncpa [#allocation5], 1
    %s684 = scalar_lea.sflag [#allocation5], 1
    %685 = vsyncpa %s684, 1

</llo_original>
